<compile_context>
chip_gen: v7x
topology: tpu7x:2x2x1
jax: 0.10.0
libtpu: 0.0.40
codegen_flags: <defaults>
</compile_context>

<pallas_src>
import math

import numpy as np
import jax
import jax.numpy as jnp
from jax.experimental import pallas as pl
from jax.experimental.pallas import tpu as pltpu

_EPS = 1e-9


# ----------------------------------------------------------------------------- shared math
def _approx_atan2(y, x):
    """atan2 built from basic VPU ops (Mosaic has no native atan2 lowering)."""
    ax, ay = jnp.abs(x), jnp.abs(y)
    t = jnp.minimum(ax, ay) / (jnp.maximum(ax, ay) + 1e-30)
    s = t * t
    # A&S 4.4.47 polynomial, |err| < 1e-5 rad on [0, 1]
    r = t * (0.9998660 + s * (-0.3302995 + s * (0.1801410 + s * (-0.0851330 + s * 0.0208351))))
    r = jnp.where(ay > ax, (math.pi / 2) - r, r)
    r = jnp.where(x < 0.0, math.pi - r, r)
    return jnp.where(y < 0.0, -r, r)


def _cross(a, b):
    return [a[1] * b[2] - a[2] * b[1],
            a[2] * b[0] - a[0] * b[2],
            a[0] * b[1] - a[1] * b[0]]


def _dot3(a, b):
    return a[0] * b[0] + a[1] * b[1] + a[2] * b[2]


def _dihedral(p0, p1, p2, p3):
    """Signed dihedral; each point is a list of three (T, N) arrays (torsions on sublanes)."""
    b1 = [p1[c] - p0[c] for c in range(3)]
    b2 = [p2[c] - p1[c] for c in range(3)]
    b3 = [p3[c] - p2[c] for c in range(3)]
    n1 = _cross(b1, b2)
    n2 = _cross(b2, b3)
    inv_b2 = jax.lax.rsqrt(_dot3(b2, b2) + _EPS)
    m1 = _cross(n1, [c * inv_b2 for c in b2])
    return _approx_atan2(_dot3(m1, n2), _dot3(n1, n2))


def _bin_weights_T(ang, bbstart, inv_step, nbins, iota):
    """Periodic linear-interp weights: bins on sublanes, rows on lanes. (1,N) -> (nbins,N).

    `iota` is the shared (nbins, N) broadcasted iota (built once per tile).  The wrap uses
    compare+select instead of an integer modulo (i0 is provably in [-1, nbins] since the
    angle is within ~1e-5 rad of [-pi, pi])."""
    u = (ang - bbstart) * inv_step
    i0f = jnp.floor(u)
    frac = u - i0f
    i0 = i0f.astype(jnp.int32)
    i0 = jnp.where(i0 < 0, i0 + nbins, i0)
    i0 = jnp.where(i0 >= nbins, i0 - nbins, i0)
    i1 = i0 + 1
    i1 = jnp.where(i1 >= nbins, i1 - nbins, i1)
    return ((iota == i0).astype(jnp.float32) * (1.0 - frac)
            + (iota == i1).astype(jnp.float32) * frac)


def _score_tile(blk, tab, nt_r, nt_o, nb, rgrid, ogrid, grids_equal):
    """Per-row rama/omega energies for one lane-dense tile.

    blk  : (36 + nt_r + nt_o, N) packed features (Pallas Ref inside the kernel, or a plain
           array in the pure-JAX reference).  xyz rows are ordered feature = atom*9 +
           coord*3 + torsion; then the rama one-hot; then the omega one-hot (one-hots
           already carry validity masks).
    tab  : ((nt_r + 2*nt_o)*nb, nb) stacked tables: rama tables first
           (row t*nb+b = T_t[:, b]) then omega mu/sigma (row nt_r*nb + (2t+k)*nb + b).
    rgrid/ogrid : Python-constant 4-tuples (bbstart_phi, bbstart_psi, 1/step_phi, 1/step_psi).
    Returns (2, N): row 0 = rama energy per row, row 1 = omega energy per row.
    """
    def pt(a):
        base = a * 9
        return [blk[base + 3 * c: base + 3 * c + 3, :] for c in range(3)]

    # One batched dihedral chain for phi/psi/omega on (3, N) operands.
    ang = _dihedral(pt(0), pt(1), pt(2), pt(3))            # (3, N)
    phi, psi, omg = ang[0:1, :], ang[1:2, :], ang[2:3, :]
    n = ang.shape[-1]

    iota = jax.lax.broadcasted_iota(jnp.int32, (nb, n), 0)  # built once, shared
    wp_r = _bin_weights_T(phi, rgrid[0], rgrid[2], nb, iota)
    ws_r = _bin_weights_T(psi, rgrid[1], rgrid[3], nb, iota)

    nr = nt_r * nb
    # TODO(synk): tmol uses bicubic-spline interpolation of its tables; bilinear is used here.
    if grids_equal:
        ws_o = ws_r
        tmp = jnp.dot(tab, wp_r, preferred_element_type=jnp.float32)    # single MXU matmul
        tmp_r, r0 = tmp, 0
        tmp_o, o0 = tmp, nr
    else:
        wp_o = _bin_weights_T(phi, ogrid[0], ogrid[2], nb, iota)
        ws_o = _bin_weights_T(psi, ogrid[1], ogrid[3], nb, iota)
        tmp_r, r0 = jnp.dot(tab[:nr, :], wp_r, preferred_element_type=jnp.float32), 0
        tmp_o, o0 = jnp.dot(tab[nr:, :], wp_o, preferred_element_type=jnp.float32), 0

    off_r = 36
    off_o = 36 + nt_r
    oh_r = blk[off_r:off_r + nt_r, :]        # one slab load per family
    oh_o = blk[off_o:off_o + nt_o, :]

    # Rama: contract over tables with one-hot FMAs on the VPU, then ONE sublane reduce.
    tsel = oh_r[0:1, :] * tmp_r[r0:r0 + nb, :]
    for t in range(1, nt_r):
        tsel = tsel + oh_r[t:t + 1, :] * tmp_r[r0 + t * nb: r0 + (t + 1) * nb, :]
    e_rama = jnp.sum(tsel * ws_r, axis=0, keepdims=True)

    # Omega: same pattern for mu / sigma, then
    # E = 0.5 * ((omega_deg - mu) / sigma)^2 with periodic wrap.
    # TODO(synk): exact tmol omega functional form may differ in constants/terms.
    mu_sel = oh_o[0:1, :] * tmp_o[o0: o0 + nb, :]
    sig_sel = oh_o[0:1, :] * tmp_o[o0 + nb: o0 + 2 * nb, :]
    valid = oh_o[0:1, :]
    for t in range(1, nt_o):
        base = o0 + 2 * t * nb
        oh = oh_o[t:t + 1, :]
        mu_sel = mu_sel + oh * tmp_o[base: base + nb, :]
        sig_sel = sig_sel + oh * tmp_o[base + nb: base + 2 * nb, :]
        valid = valid + oh
    mu = jnp.sum(mu_sel * ws_o, axis=0, keepdims=True)
    sig = jnp.sum(sig_sel * ws_o, axis=0, keepdims=True)

    omg_deg = omg * (180.0 / math.pi)
    d = omg_deg - mu
    d = d - 360.0 * jnp.floor(d * (1.0 / 360.0) + 0.5)
    ratio = d / jnp.maximum(sig, 1e-4)           # clamp: masked/padded rows have sig == 0
    e_omega = valid * (0.5 * ratio * ratio)      # mask applied before any chance of inf

    return jnp.concatenate([e_rama, e_omega], axis=0)       # (2, N)


# ----------------------------------------------------------------------------- Pallas kernel
def _make_kernel(nt_r, nt_o, nb, rgrid, ogrid, grids_equal):
    def kernel(packed_ref, tab_ref, out_ref):
        out_ref[...] = _score_tile(packed_ref, tab_ref[...], nt_r, nt_o, nb,
                                   rgrid, ogrid, grids_equal)
    return kernel


def _choose_tile(n_rows, max_tile=1024):
    """Lane tile: a multiple of 128, as large as useful (amortize per-step overhead), but
    capped near half the rounded row count so n_tiles >= 2 keeps both v7x TCs busy."""
    def up128(n):
        return max(128, ((n + 127) // 128) * 128)
    full = up128(n_rows)
    if full <= 128:
        return 128
    half = up128((n_rows + 1) // 2)
    return min(max_tile, half, full)


def _backbone_torsion_pallas(packed_t, tables_stack, P, B, nt_r, nt_o, nbins,
                             rgrid, ogrid, grids_equal, max_tile=1024):
    feat, n_rows = packed_t.shape
    tile = _choose_tile(n_rows, max_tile)
    n_tiles = pl.cdiv(max(n_rows, 1), tile)
    n_pad = n_tiles * tile
    packed_pad = jnp.pad(packed_t, ((0, 0), (0, n_pad - n_rows)))
    nt_rows = tables_stack.shape[0]

    kernel = _make_kernel(nt_r, nt_o, nbins, rgrid, ogrid, grids_equal)
    row_e = pl.pallas_call(
        kernel,
        out_shape=jax.ShapeDtypeStruct((2, n_pad), jnp.float32),
        grid=(n_tiles,),
        in_specs=[
            pl.BlockSpec((feat, tile), lambda t: (0, t)),          # packed per-row features
            pl.BlockSpec((nt_rows, nbins), lambda t: (0, 0)),      # stacked rama+omega tables
        ],
        out_specs=pl.BlockSpec((2, tile), lambda t: (0, t)),       # disjoint lane-dense output
        compiler_params=pltpu.CompilerParams(dimension_semantics=("parallel",)),
    )(packed_pad, tables_stack)

    # Per-pose reduction (tiny) in plain JAX.
    return jnp.sum(row_e[:, :n_rows].reshape(2, P, B), axis=2)     # [2, n_poses]


# ----------------------------------------------------------------------------- module
class BackboneTorsionWholePoseScoringModule:
    def __init__(self, pose_stack_block_coord_offset, pose_stack_block_type,
                 pose_stack_inter_residue_connections, bt_atom_downstream_of_conn,
                 bt_rama_table, bt_omega_table, bt_upper_conn_ind, bt_is_pro,
                 bt_backbone_torsion_atoms, rama_tables, omega_tables,
                 rama_table_params, omega_table_params):
        self.pose_stack_block_coord_offset = jnp.asarray(pose_stack_block_coord_offset, jnp.int32)
        self.pose_stack_block_type = jnp.asarray(pose_stack_block_type, jnp.int32)
        self.pose_stack_inter_residue_connections = jnp.asarray(
            pose_stack_inter_residue_connections, jnp.int32)
        self.bt_atom_downstream_of_conn = jnp.asarray(bt_atom_downstream_of_conn, jnp.int32)
        self.bt_rama_table = jnp.asarray(bt_rama_table, jnp.int32)
        self.bt_omega_table = jnp.asarray(bt_omega_table, jnp.int32)
        self.bt_upper_conn_ind = jnp.asarray(bt_upper_conn_ind, jnp.int32)
        self.bt_is_pro = jnp.asarray(bt_is_pro, jnp.int32)
        self.bt_backbone_torsion_atoms = jnp.asarray(bt_backbone_torsion_atoms, jnp.int32)
        self.rama_tables = jnp.asarray(rama_tables, jnp.float32)
        self.omega_tables = jnp.asarray(omega_tables, jnp.float32)
        self.rama_table_params = jnp.asarray(rama_table_params, jnp.float32)
        self.omega_table_params = jnp.asarray(omega_table_params, jnp.float32)

        nt_r, nb, _ = self.rama_tables.shape
        nt_o = self.omega_tables.shape[0]
        self._nbins = int(nb)
        self._nt_r = int(nt_r)
        self._nt_o = int(nt_o)

        # Pre-stack tables for the fused in-kernel matmul:
        #   rt_stack[t*nb + b, a]        = rama_tables[t, a, b]
        #   ot_stack[(2t+k)*nb + b, a]   = omega_tables[t, k, a, b]   (k=0 mu, k=1 sigma)
        rt_stack = jnp.transpose(self.rama_tables, (0, 2, 1)).reshape(nt_r * nb, nb)
        ot_stack = jnp.transpose(self.omega_tables, (0, 1, 3, 2)).reshape(nt_o * 2 * nb, nb)
        self._tables_stack = jnp.concatenate([rt_stack, ot_stack], axis=0)

        # TODO(synk): assumes all tables of a family share one (bbstart, bbstep) grid (true
        # in tmol); per-table distinct grids would need per-table bin weights.
        rp = np.asarray(rama_table_params, np.float32)
        op = np.asarray(omega_table_params, np.float32)
        self._rgrid = (float(rp[0, 0]), float(rp[0, 1]),
                       1.0 / float(rp[0, 2]), 1.0 / float(rp[0, 3]))
        self._ogrid = (float(op[0, 0]), float(op[0, 1]),
                       1.0 / float(op[0, 2]), 1.0 / float(op[0, 3]))
        self._grids_equal = bool(np.allclose(rp[0], op[0]))

    # --- glue: resolve unresolved atom ids, gather coords, pick tables (plain JAX) ---
    def _prepare(self, coords):
        offs = self.pose_stack_block_coord_offset
        btype = self.pose_stack_block_type
        conn = self.pose_stack_inter_residue_connections
        P, B = btype.shape
        NT_R = self._nt_r
        NT_O = self._nt_o

        block_real = btype >= 0
        bt_safe = jnp.maximum(btype, 0)

        uaid = self.bt_backbone_torsion_atoms[bt_safe]          # [P,B,3,4,3]
        atom, cidx, nbond = uaid[..., 0], uaid[..., 1], uaid[..., 2]

        pidx = jnp.arange(P).reshape(P, 1, 1, 1)
        bidx = jnp.arange(B).reshape(1, B, 1, 1)

        # intra-residue atoms
        intra_ok = atom >= 0
        intra_idx = offs[:, :, None, None] + atom

        # atoms resolved through an inter-residue connection
        c_safe = jnp.clip(cidx, 0, conn.shape[2] - 1)
        nbr_blk = conn[pidx, bidx, c_safe, 0]
        nbr_cn = conn[pidx, bidx, c_safe, 1]
        nbr_ok = (cidx >= 0) & (nbr_blk >= 0) & (nbr_cn >= 0)
        nbr_blk_s = jnp.maximum(nbr_blk, 0)
        nbr_bt = btype[pidx, nbr_blk_s]
        down = self.bt_atom_downstream_of_conn[
            jnp.maximum(nbr_bt, 0), jnp.maximum(nbr_cn, 0), jnp.maximum(nbond, 0)]
        inter_ok = nbr_ok & (nbr_bt >= 0) & (nbond >= 0) & (down >= 0)
        inter_idx = offs[pidx, nbr_blk_s] + down

        resolved = jnp.where(intra_ok, intra_idx, jnp.where(inter_ok, inter_idx, -1))
        resolved = jnp.where(block_real[:, :, None, None], resolved, -1)
        torsion_valid = jnp.all(resolved >= 0, axis=-1)          # [P,B,3]

        # gather torsion atom coordinates
        res_s = jnp.maximum(resolved, 0)
        xyz = coords[pidx, res_s]                                 # [P,B,3,4,3]
        xyz = jnp.where((resolved >= 0)[..., None], xyz, 0.0)

        # rama table selection depends on whether the next residue is proline
        pidx2 = jnp.arange(P).reshape(P, 1)
        uc = self.bt_upper_conn_ind[bt_safe]                      # [P,B]
        uc_s = jnp.clip(uc, 0, conn.shape[2] - 1)
        nxt_blk = conn[pidx2, jnp.arange(B).reshape(1, B), uc_s, 0]
        has_next = (uc >= 0) & (nxt_blk >= 0)
        nxt_bt = btype[pidx2, jnp.maximum(nxt_blk, 0)]
        next_is_pro = jnp.where(has_next & (nxt_bt >= 0),
                                self.bt_is_pro[jnp.maximum(nxt_bt, 0)], 0)
        rama_tidx = self.bt_rama_table[bt_safe, next_is_pro]      # [P,B]
        omega_tidx = self.bt_omega_table[bt_safe]                 # [P,B]

        rama_valid = (block_real & torsion_valid[:, :, 0] & torsion_valid[:, :, 1]
                      & (rama_tidx >= 0) & (rama_tidx < NT_R))
        omega_valid = (block_real & torsion_valid[:, :, 2]
                       & (omega_tidx >= 0) & (omega_tidx < NT_O))

        rama_oh = ((rama_tidx[..., None] == jnp.arange(NT_R))
                   & rama_valid[..., None]).astype(jnp.float32)   # [P,B,NT_R]
        omega_oh = ((omega_tidx[..., None] == jnp.arange(NT_O))
                    & omega_valid[..., None]).astype(jnp.float32) # [P,B,NT_O]

        # Build the packed (feat, P*B) input directly in transposed (lane-dense) layout.
        # xyz feature index = atom*9 + coord*3 + torsion so each torsion-point coordinate is
        # a (3, N) sublane-contiguous slab inside the kernel.
        xyz_feat = jnp.transpose(xyz, (3, 4, 2, 0, 1)).reshape(36, P * B).astype(jnp.float32)
        rama_feat = jnp.transpose(rama_oh, (2, 0, 1)).reshape(NT_R, P * B)
        omega_feat = jnp.transpose(omega_oh, (2, 0, 1)).reshape(NT_O, P * B)
        return jnp.concatenate([xyz_feat, rama_feat, omega_feat], axis=0)

    def __call__(self, coords, output_block_pair_energies=False):
        if output_block_pair_energies:
            # TODO(synk): block-pair energy output (output_block_pair_energies=True) not implemented.
            raise NotImplementedError("output_block_pair_energies=True not supported")
        # TODO(synk): torch float64 path (convert_float64) collapsed to float32 on TPU.
        coords = jnp.asarray(coords, jnp.float32)
        packed_t = self._prepare(coords)
        P, B = self.pose_stack_block_type.shape
        return _backbone_torsion_pallas(
            packed_t, self._tables_stack, P, B,
            self._nt_r, self._nt_o, self._nbins,
            self._rgrid, self._ogrid, self._grids_equal)


# ----------------------------------------------------------------------------- reference
def _reference(packed_t, tables_stack, P, B, nt_r, nt_o, nbins, rgrid, ogrid, grids_equal):
    e = _score_tile(packed_t, tables_stack, nt_r, nt_o, nbins, rgrid, ogrid, grids_equal)
    return jnp.sum(e.reshape(2, P, B), axis=2)


# ----------------------------------------------------------------------------- main
if __name__ == "__main__":
    P, B = 2, 8                 # poses, blocks (residues) per pose
    NBT, NAT = 4, 16            # block types, atoms per block (0=N, 1=CA, 2=C, 3=O, ...)
    NCONN, NDOWN = 2, 3
    NT_R, NT_O, NB = 3, 2, 36   # rama tables, omega tables, bins per torsion

    key = jax.random.PRNGKey(0)
    k_coords, k_rama, k_mu, k_sig = jax.random.split(key, 4)

    coords = jax.random.normal(k_coords, (P, B * NAT, 3), jnp.float32) * 3.0

    block_type = np.full((P, B), -1, np.int32)
    block_type[0] = [0, 1, 2, 3, 0, 1, 2, 3]
    block_type[1, :7] = [3, 2, 1, 0, 3, 2, 1]         # pose 1 has a padded (empty) block
    n_res = [8, 7]

    block_offset = np.tile(np.arange(B, dtype=np.int32)[None, :] * NAT, (P, 1))

    inter = np.full((P, B, NCONN, 2), -1, np.int32)
    for p in range(P):
        for i in range(n_res[p]):
            if i > 0:
                inter[p, i, 0] = (i - 1, 1)           # lower conn -> previous residue's upper conn
            if i < n_res[p] - 1:
                inter[p, i, 1] = (i + 1, 0)           # upper conn -> next residue's lower conn

    downstream = np.full((NBT, NCONN, NDOWN), -1, np.int32)
    downstream[:, 0] = [0, 1, 2]                      # downstream of lower conn: N, CA, C
    downstream[:, 1] = [2, 1, 0]                      # downstream of upper conn: C, CA, N

    uaid = np.full((NBT, 3, 4, 3), -1, np.int32)      # unresolved atom ids (atom, conn, bonds)
    for bt in range(NBT):
        uaid[bt, 0] = [[-1, 0, 0], [0, -1, -1], [1, -1, -1], [2, -1, -1]]   # phi: C(-1) N CA C
        uaid[bt, 1] = [[0, -1, -1], [1, -1, -1], [2, -1, -1], [-1, 1, 0]]   # psi: N CA C N(+1)
        uaid[bt, 2] = [[1, -1, -1], [2, -1, -1], [-1, 1, 0], [-1, 1, 1]]    # omega: CA C N(+1) CA(+1)

    bt_rama_table = np.array([[0, 1], [0, 1], [2, 1], [0, 1]], np.int32)    # (default, pre-pro)
    bt_omega_table = np.array([0, 0, 1, 0], np.int32)
    bt_upper_conn_ind = np.array([1, 1, 1, 1], np.int32)
    bt_is_pro = np.array([0, 0, 1, 0], np.int32)

    rama_tables = jax.random.normal(k_rama, (NT_R, NB, NB), jnp.float32) * 0.5
    omega_mu = 180.0 + 5.0 * jax.random.normal(k_mu, (NT_O, NB, NB), jnp.float32)
    omega_sig = 5.0 + 3.0 * jax.random.uniform(k_sig, (NT_O, NB, NB), jnp.float32)
    omega_tables = jnp.stack([omega_mu, omega_sig], axis=1)                 # [NT_O, 2, NB, NB]

    bbstart, bbstep = -math.pi, 2.0 * math.pi / NB
    rama_table_params = jnp.tile(
        jnp.array([[bbstart, bbstart, bbstep, bbstep]], jnp.float32), (NT_R, 1))
    omega_table_params = jnp.tile(
        jnp.array([[bbstart, bbstart, bbstep, bbstep]], jnp.float32), (NT_O, 1))

    module = BackboneTorsionWholePoseScoringModule(
        block_offset, block_type, inter, downstream,
        bt_rama_table, bt_omega_table, bt_upper_conn_ind, bt_is_pro, uaid,
        rama_tables, omega_tables, rama_table_params, omega_table_params)

    out = module(coords)
    out = jax.block_until_ready(out)

    # pure-JAX reference on the same prepared inputs / pre-stacked tables
    # TODO(synk): this validates Pallas lowering only; functional deviations from tmol
    # (bilinear vs bicubic table interpolation, omega constants) are acknowledged above.
    packed_t = module._prepare(coords)
    ref = _reference(packed_t, module._tables_stack, P, B,
                     module._nt_r, module._nt_o, module._nbins,
                     module._rgrid, module._ogrid, module._grids_equal)

    assert out.shape == (2, P)
    assert bool(jnp.all(jnp.isfinite(out)))
    np.testing.assert_allclose(np.asarray(out), np.asarray(ref), rtol=2e-2, atol=1e-1)
    print("KERNEL_OK")
</pallas_src>

<mosaic_0001>
module attributes {stable_mosaic.version = 11 : i64} {
  func.func @kernel(%arg0: i32, %arg1: memref<41x128xf32, #tpu.memory_space<vmem>>, %arg2: memref<252x36xf32, #tpu.memory_space<vmem>>, %arg3: memref<2x128xf32, #tpu.memory_space<vmem>>) attributes {dimension_semantics = [#tpu.dimension_semantics<parallel>], iteration_bounds = array<i64: 1>, scalar_prefetch = 0 : i64, scratch_operands = 0 : i64, tpu.core_type = #tpu.core_type<tc>, window_params = [{transform_indices = @transform_0, window_bounds = array<i64: 41, 128>}, {pipeline_mode = #tpu.pipeline_mode<synchronous>, transform_indices = @transform_1, window_bounds = array<i64: 252, 36>}, {transform_indices = @transform_2, window_bounds = array<i64: 2, 128>}]} {
    %c0 = arith.constant 0 : index
    %c0_0 = arith.constant 0 : index
    %0 = vector.load %arg2[%c0, %c0_0] : memref<252x36xf32, #tpu.memory_space<vmem>>, vector<252x36xf32>
    %c0_1 = arith.constant 0 : index
    %c0_2 = arith.constant 0 : index
    %1 = vector.load %arg1[%c0_1, %c0_2] : memref<41x128xf32, #tpu.memory_space<vmem>>, vector<3x128xf32>
    %c3 = arith.constant 3 : index
    %c0_3 = arith.constant 0 : index
    %2 = vector.load %arg1[%c3, %c0_3] : memref<41x128xf32, #tpu.memory_space<vmem>>, vector<3x128xf32>
    %c6 = arith.constant 6 : index
    %c0_4 = arith.constant 0 : index
    %3 = vector.load %arg1[%c6, %c0_4] : memref<41x128xf32, #tpu.memory_space<vmem>>, vector<3x128xf32>
    %c9 = arith.constant 9 : index
    %c0_5 = arith.constant 0 : index
    %4 = vector.load %arg1[%c9, %c0_5] : memref<41x128xf32, #tpu.memory_space<vmem>>, vector<3x128xf32>
    %c12 = arith.constant 12 : index
    %c0_6 = arith.constant 0 : index
    %5 = vector.load %arg1[%c12, %c0_6] : memref<41x128xf32, #tpu.memory_space<vmem>>, vector<3x128xf32>
    %c15 = arith.constant 15 : index
    %c0_7 = arith.constant 0 : index
    %6 = vector.load %arg1[%c15, %c0_7] : memref<41x128xf32, #tpu.memory_space<vmem>>, vector<3x128xf32>
    %c18 = arith.constant 18 : index
    %c0_8 = arith.constant 0 : index
    %7 = vector.load %arg1[%c18, %c0_8] : memref<41x128xf32, #tpu.memory_space<vmem>>, vector<3x128xf32>
    %c21 = arith.constant 21 : index
    %c0_9 = arith.constant 0 : index
    %8 = vector.load %arg1[%c21, %c0_9] : memref<41x128xf32, #tpu.memory_space<vmem>>, vector<3x128xf32>
    %c24 = arith.constant 24 : index
    %c0_10 = arith.constant 0 : index
    %9 = vector.load %arg1[%c24, %c0_10] : memref<41x128xf32, #tpu.memory_space<vmem>>, vector<3x128xf32>
    %c27 = arith.constant 27 : index
    %c0_11 = arith.constant 0 : index
    %10 = vector.load %arg1[%c27, %c0_11] : memref<41x128xf32, #tpu.memory_space<vmem>>, vector<3x128xf32>
    %c30 = arith.constant 30 : index
    %c0_12 = arith.constant 0 : index
    %11 = vector.load %arg1[%c30, %c0_12] : memref<41x128xf32, #tpu.memory_space<vmem>>, vector<3x128xf32>
    %c33 = arith.constant 33 : index
    %c0_13 = arith.constant 0 : index
    %12 = vector.load %arg1[%c33, %c0_13] : memref<41x128xf32, #tpu.memory_space<vmem>>, vector<3x128xf32>
    %13 = arith.subf %4, %1 : vector<3x128xf32>
    %14 = arith.subf %5, %2 : vector<3x128xf32>
    %15 = arith.subf %6, %3 : vector<3x128xf32>
    %16 = arith.subf %7, %4 : vector<3x128xf32>
    %17 = arith.subf %8, %5 : vector<3x128xf32>
    %18 = arith.subf %9, %6 : vector<3x128xf32>
    %19 = arith.subf %10, %7 : vector<3x128xf32>
    %20 = arith.subf %11, %8 : vector<3x128xf32>
    %21 = arith.subf %12, %9 : vector<3x128xf32>
    %22 = arith.mulf %14, %18 : vector<3x128xf32>
    %23 = arith.mulf %15, %17 : vector<3x128xf32>
    %24 = arith.subf %22, %23 : vector<3x128xf32>
    %25 = arith.mulf %15, %16 : vector<3x128xf32>
    %26 = arith.mulf %13, %18 : vector<3x128xf32>
    %27 = arith.subf %25, %26 : vector<3x128xf32>
    %28 = arith.mulf %13, %17 : vector<3x128xf32>
    %29 = arith.mulf %14, %16 : vector<3x128xf32>
    %30 = arith.subf %28, %29 : vector<3x128xf32>
    %31 = arith.mulf %17, %21 : vector<3x128xf32>
    %32 = arith.mulf %18, %20 : vector<3x128xf32>
    %33 = arith.subf %31, %32 : vector<3x128xf32>
    %34 = arith.mulf %18, %19 : vector<3x128xf32>
    %35 = arith.mulf %16, %21 : vector<3x128xf32>
    %36 = arith.subf %34, %35 : vector<3x128xf32>
    %37 = arith.mulf %16, %20 : vector<3x128xf32>
    %38 = arith.mulf %17, %19 : vector<3x128xf32>
    %39 = arith.subf %37, %38 : vector<3x128xf32>
    %40 = arith.mulf %16, %16 : vector<3x128xf32>
    %41 = arith.mulf %17, %17 : vector<3x128xf32>
    %42 = arith.addf %40, %41 : vector<3x128xf32>
    %43 = arith.mulf %18, %18 : vector<3x128xf32>
    %44 = arith.addf %42, %43 : vector<3x128xf32>
    %cst = arith.constant 9.99999971E-10 : f32
    %45 = vector.broadcast %cst : f32 to vector<3x128xf32>
    %46 = arith.addf %44, %45 : vector<3x128xf32>
    %47 = math.rsqrt %46 : vector<3x128xf32>
    %48 = arith.mulf %16, %47 : vector<3x128xf32>
    %49 = arith.mulf %17, %47 : vector<3x128xf32>
    %50 = arith.mulf %18, %47 : vector<3x128xf32>
    %51 = arith.mulf %27, %50 : vector<3x128xf32>
    %52 = arith.mulf %30, %49 : vector<3x128xf32>
    %53 = arith.subf %51, %52 : vector<3x128xf32>
    %54 = arith.mulf %30, %48 : vector<3x128xf32>
    %55 = arith.mulf %24, %50 : vector<3x128xf32>
    %56 = arith.subf %54, %55 : vector<3x128xf32>
    %57 = arith.mulf %24, %49 : vector<3x128xf32>
    %58 = arith.mulf %27, %48 : vector<3x128xf32>
    %59 = arith.subf %57, %58 : vector<3x128xf32>
    %60 = arith.mulf %53, %33 : vector<3x128xf32>
    %61 = arith.mulf %56, %36 : vector<3x128xf32>
    %62 = arith.addf %60, %61 : vector<3x128xf32>
    %63 = arith.mulf %59, %39 : vector<3x128xf32>
    %64 = arith.addf %62, %63 : vector<3x128xf32>
    %65 = arith.mulf %24, %33 : vector<3x128xf32>
    %66 = arith.mulf %27, %36 : vector<3x128xf32>
    %67 = arith.addf %65, %66 : vector<3x128xf32>
    %68 = arith.mulf %30, %39 : vector<3x128xf32>
    %69 = arith.addf %67, %68 : vector<3x128xf32>
    %70 = math.absf %69 : vector<3x128xf32>
    %71 = math.absf %64 : vector<3x128xf32>
    %72 = arith.minimumf %70, %71 : vector<3x128xf32>
    %73 = arith.maximumf %70, %71 : vector<3x128xf32>
    %cst_14 = arith.constant 1.000000e-30 : f32
    %74 = vector.broadcast %cst_14 : f32 to vector<3x128xf32>
    %75 = arith.addf %73, %74 : vector<3x128xf32>
    %76 = arith.divf %72, %75 : vector<3x128xf32>
    %77 = arith.mulf %76, %76 : vector<3x128xf32>
    %cst_15 = arith.constant 2.083510e-02 : f32
    %78 = vector.broadcast %cst_15 : f32 to vector<3x128xf32>
    %79 = arith.mulf %77, %78 : vector<3x128xf32>
    %cst_16 = arith.constant -8.513300e-02 : f32
    %80 = vector.broadcast %cst_16 : f32 to vector<3x128xf32>
    %81 = arith.addf %80, %79 : vector<3x128xf32>
    %82 = arith.mulf %77, %81 : vector<3x128xf32>
    %cst_17 = arith.constant 1.801410e-01 : f32
    %83 = vector.broadcast %cst_17 : f32 to vector<3x128xf32>
    %84 = arith.addf %83, %82 : vector<3x128xf32>
    %85 = arith.mulf %77, %84 : vector<3x128xf32>
    %cst_18 = arith.constant -0.330299497 : f32
    %86 = vector.broadcast %cst_18 : f32 to vector<3x128xf32>
    %87 = arith.addf %86, %85 : vector<3x128xf32>
    %88 = arith.mulf %77, %87 : vector<3x128xf32>
    %cst_19 = arith.constant 9.998660e-01 : f32
    %89 = vector.broadcast %cst_19 : f32 to vector<3x128xf32>
    %90 = arith.addf %89, %88 : vector<3x128xf32>
    %91 = arith.mulf %76, %90 : vector<3x128xf32>
    %92 = arith.cmpf ogt, %71, %70 : vector<3x128xf32>
    %cst_20 = arith.constant 1.57079637 : f32
    %93 = vector.broadcast %cst_20 : f32 to vector<3x128xf32>
    %94 = arith.subf %93, %91 : vector<3x128xf32>
    %95 = arith.select %92, %94, %91 : vector<3x128xi1>, vector<3x128xf32>
    %cst_21 = arith.constant 0.000000e+00 : f32
    %96 = vector.broadcast %cst_21 : f32 to vector<3x128xf32>
    %97 = arith.cmpf olt, %69, %96 : vector<3x128xf32>
    %cst_22 = arith.constant 3.14159274 : f32
    %98 = vector.broadcast %cst_22 : f32 to vector<3x128xf32>
    %99 = arith.subf %98, %95 : vector<3x128xf32>
    %100 = arith.select %97, %99, %95 : vector<3x128xi1>, vector<3x128xf32>
    %cst_23 = arith.constant 0.000000e+00 : f32
    %101 = vector.broadcast %cst_23 : f32 to vector<3x128xf32>
    %102 = arith.cmpf olt, %64, %101 : vector<3x128xf32>
    %cst_24 = arith.constant 0.000000e+00 : f32
    %103 = vector.broadcast %cst_24 : f32 to vector<3x128xf32>
    %104 = arith.subf %103, %100 : vector<3x128xf32>
    %105 = arith.select %102, %104, %100 : vector<3x128xi1>, vector<3x128xf32>
    %106 = vector.extract_strided_slice %105 {offsets = [0, 0], sizes = [1, 128], strides = [1, 1]} : vector<3x128xf32> to vector<1x128xf32>
    %107 = vector.extract_strided_slice %105 {offsets = [1, 0], sizes = [1, 128], strides = [1, 1]} : vector<3x128xf32> to vector<1x128xf32>
    %108 = vector.extract_strided_slice %105 {offsets = [2, 0], sizes = [1, 128], strides = [1, 1]} : vector<3x128xf32> to vector<1x128xf32>
    %109 = tpu.iota {dimensions = array<i32: 0>} : vector<36x128xi32>
    %cst_25 = arith.constant -3.14159274 : f32
    %110 = vector.broadcast %cst_25 : f32 to vector<1x128xf32>
    %111 = arith.subf %106, %110 : vector<1x128xf32>
    %cst_26 = arith.constant 5.72957802 : f32
    %112 = vector.broadcast %cst_26 : f32 to vector<1x128xf32>
    %113 = arith.mulf %111, %112 : vector<1x128xf32>
    %114 = math.floor %113 : vector<1x128xf32>
    %115 = arith.subf %113, %114 : vector<1x128xf32>
    %116 = arith.fptosi %114 : vector<1x128xf32> to vector<1x128xi32>
    %c0_i32 = arith.constant 0 : i32
    %117 = vector.broadcast %c0_i32 : i32 to vector<1x128xi32>
    %118 = arith.cmpi slt, %116, %117 : vector<1x128xi32>
    %c36_i32 = arith.constant 36 : i32
    %119 = vector.broadcast %c36_i32 : i32 to vector<1x128xi32>
    %120 = arith.addi %116, %119 : vector<1x128xi32>
    %121 = arith.select %118, %120, %116 : vector<1x128xi1>, vector<1x128xi32>
    %c36_i32_27 = arith.constant 36 : i32
    %122 = vector.broadcast %c36_i32_27 : i32 to vector<1x128xi32>
    %123 = arith.cmpi sge, %121, %122 : vector<1x128xi32>
    %c36_i32_28 = arith.constant 36 : i32
    %124 = vector.broadcast %c36_i32_28 : i32 to vector<1x128xi32>
    %125 = arith.subi %121, %124 : vector<1x128xi32>
    %126 = arith.select %123, %125, %121 : vector<1x128xi1>, vector<1x128xi32>
    %c1_i32 = arith.constant 1 : i32
    %127 = vector.broadcast %c1_i32 : i32 to vector<1x128xi32>
    %128 = arith.addi %126, %127 : vector<1x128xi32>
    %c36_i32_29 = arith.constant 36 : i32
    %129 = vector.broadcast %c36_i32_29 : i32 to vector<1x128xi32>
    %130 = arith.cmpi sge, %128, %129 : vector<1x128xi32>
    %c36_i32_30 = arith.constant 36 : i32
    %131 = vector.broadcast %c36_i32_30 : i32 to vector<1x128xi32>
    %132 = arith.subi %128, %131 : vector<1x128xi32>
    %133 = arith.select %130, %132, %128 : vector<1x128xi1>, vector<1x128xi32>
    %134 = vector.broadcast %126 : vector<1x128xi32> to vector<36x128xi32>
    %135 = arith.cmpi eq, %109, %134 : vector<36x128xi32>
    %136 = arith.extui %135 : vector<36x128xi1> to vector<36x128xi32>
    %137 = arith.sitofp %136 : vector<36x128xi32> to vector<36x128xf32>
    %cst_31 = arith.constant 1.000000e+00 : f32
    %138 = vector.broadcast %cst_31 : f32 to vector<1x128xf32>
    %139 = arith.subf %138, %115 : vector<1x128xf32>
    %140 = vector.broadcast %139 : vector<1x128xf32> to vector<36x128xf32>
    %141 = arith.mulf %137, %140 : vector<36x128xf32>
    %142 = vector.broadcast %133 : vector<1x128xi32> to vector<36x128xi32>
    %143 = arith.cmpi eq, %109, %142 : vector<36x128xi32>
    %144 = arith.extui %143 : vector<36x128xi1> to vector<36x128xi32>
    %145 = arith.sitofp %144 : vector<36x128xi32> to vector<36x128xf32>
    %146 = vector.broadcast %115 : vector<1x128xf32> to vector<36x128xf32>
    %147 = arith.mulf %145, %146 : vector<36x128xf32>
    %148 = arith.addf %141, %147 : vector<36x128xf32>
    %cst_32 = arith.constant -3.14159274 : f32
    %149 = vector.broadcast %cst_32 : f32 to vector<1x128xf32>
    %150 = arith.subf %107, %149 : vector<1x128xf32>
    %cst_33 = arith.constant 5.72957802 : f32
    %151 = vector.broadcast %cst_33 : f32 to vector<1x128xf32>
    %152 = arith.mulf %150, %151 : vector<1x128xf32>
    %153 = math.floor %152 : vector<1x128xf32>
    %154 = arith.subf %152, %153 : vector<1x128xf32>
    %155 = arith.fptosi %153 : vector<1x128xf32> to vector<1x128xi32>
    %c0_i32_34 = arith.constant 0 : i32
    %156 = vector.broadcast %c0_i32_34 : i32 to vector<1x128xi32>
    %157 = arith.cmpi slt, %155, %156 : vector<1x128xi32>
    %c36_i32_35 = arith.constant 36 : i32
    %158 = vector.broadcast %c36_i32_35 : i32 to vector<1x128xi32>
    %159 = arith.addi %155, %158 : vector<1x128xi32>
    %160 = arith.select %157, %159, %155 : vector<1x128xi1>, vector<1x128xi32>
    %c36_i32_36 = arith.constant 36 : i32
    %161 = vector.broadcast %c36_i32_36 : i32 to vector<1x128xi32>
    %162 = arith.cmpi sge, %160, %161 : vector<1x128xi32>
    %c36_i32_37 = arith.constant 36 : i32
    %163 = vector.broadcast %c36_i32_37 : i32 to vector<1x128xi32>
    %164 = arith.subi %160, %163 : vector<1x128xi32>
    %165 = arith.select %162, %164, %160 : vector<1x128xi1>, vector<1x128xi32>
    %c1_i32_38 = arith.constant 1 : i32
    %166 = vector.broadcast %c1_i32_38 : i32 to vector<1x128xi32>
    %167 = arith.addi %165, %166 : vector<1x128xi32>
    %c36_i32_39 = arith.constant 36 : i32
    %168 = vector.broadcast %c36_i32_39 : i32 to vector<1x128xi32>
    %169 = arith.cmpi sge, %167, %168 : vector<1x128xi32>
    %c36_i32_40 = arith.constant 36 : i32
    %170 = vector.broadcast %c36_i32_40 : i32 to vector<1x128xi32>
    %171 = arith.subi %167, %170 : vector<1x128xi32>
    %172 = arith.select %169, %171, %167 : vector<1x128xi1>, vector<1x128xi32>
    %173 = vector.broadcast %165 : vector<1x128xi32> to vector<36x128xi32>
    %174 = arith.cmpi eq, %109, %173 : vector<36x128xi32>
    %175 = arith.extui %174 : vector<36x128xi1> to vector<36x128xi32>
    %176 = arith.sitofp %175 : vector<36x128xi32> to vector<36x128xf32>
    %cst_41 = arith.constant 1.000000e+00 : f32
    %177 = vector.broadcast %cst_41 : f32 to vector<1x128xf32>
    %178 = arith.subf %177, %154 : vector<1x128xf32>
    %179 = vector.broadcast %178 : vector<1x128xf32> to vector<36x128xf32>
    %180 = arith.mulf %176, %179 : vector<36x128xf32>
    %181 = vector.broadcast %172 : vector<1x128xi32> to vector<36x128xi32>
    %182 = arith.cmpi eq, %109, %181 : vector<36x128xi32>
    %183 = arith.extui %182 : vector<36x128xi1> to vector<36x128xi32>
    %184 = arith.sitofp %183 : vector<36x128xi32> to vector<36x128xf32>
    %185 = vector.broadcast %154 : vector<1x128xf32> to vector<36x128xf32>
    %186 = arith.mulf %184, %185 : vector<36x128xf32>
    %187 = arith.addf %180, %186 : vector<36x128xf32>
    %cst_42 = arith.constant dense<0.000000e+00> : vector<252x128xf32>
    %188 = tpu.matmul %0, %148, %cst_42 {dimension_numbers = #tpu.dot_dimension_numbers<[1], [0], [0], [1], [0, 0, 1, 1], [], []>} : vector<252x36xf32>, vector<36x128xf32>, vector<252x128xf32> -> vector<252x128xf32>
    %c36 = arith.constant 36 : index
    %c0_43 = arith.constant 0 : index
    %189 = vector.load %arg1[%c36, %c0_43] : memref<41x128xf32, #tpu.memory_space<vmem>>, vector<3x128xf32>
    %c39 = arith.constant 39 : index
    %c0_44 = arith.constant 0 : index
    %190 = vector.load %arg1[%c39, %c0_44] : memref<41x128xf32, #tpu.memory_space<vmem>>, vector<2x128xf32>
    %191 = vector.extract_strided_slice %189 {offsets = [0, 0], sizes = [1, 128], strides = [1, 1]} : vector<3x128xf32> to vector<1x128xf32>
    %192 = vector.extract_strided_slice %188 {offsets = [0, 0], sizes = [36, 128], strides = [1, 1]} : vector<252x128xf32> to vector<36x128xf32>
    %193 = vector.broadcast %191 : vector<1x128xf32> to vector<36x128xf32>
    %194 = arith.mulf %193, %192 : vector<36x128xf32>
    %195 = vector.extract_strided_slice %189 {offsets = [1, 0], sizes = [1, 128], strides = [1, 1]} : vector<3x128xf32> to vector<1x128xf32>
    %196 = vector.extract_strided_slice %188 {offsets = [36, 0], sizes = [36, 128], strides = [1, 1]} : vector<252x128xf32> to vector<36x128xf32>
    %197 = vector.broadcast %195 : vector<1x128xf32> to vector<36x128xf32>
    %198 = arith.mulf %197, %196 : vector<36x128xf32>
    %199 = arith.addf %194, %198 : vector<36x128xf32>
    %200 = vector.extract_strided_slice %189 {offsets = [2, 0], sizes = [1, 128], strides = [1, 1]} : vector<3x128xf32> to vector<1x128xf32>
    %201 = vector.extract_strided_slice %188 {offsets = [72, 0], sizes = [36, 128], strides = [1, 1]} : vector<252x128xf32> to vector<36x128xf32>
    %202 = vector.broadcast %200 : vector<1x128xf32> to vector<36x128xf32>
    %203 = arith.mulf %202, %201 : vector<36x128xf32>
    %204 = arith.addf %199, %203 : vector<36x128xf32>
    %205 = arith.mulf %204, %187 : vector<36x128xf32>
    %cst_45 = arith.constant dense<0.000000e+00> : vector<128xf32>
    %206 = vector.multi_reduction <add>, %205, %cst_45 [0] : vector<36x128xf32> to vector<128xf32>
    %207 = vector.shape_cast %206 : vector<128xf32> to vector<1x128xf32>
    %208 = vector.extract_strided_slice %190 {offsets = [0, 0], sizes = [1, 128], strides = [1, 1]} : vector<2x128xf32> to vector<1x128xf32>
    %209 = vector.extract_strided_slice %188 {offsets = [108, 0], sizes = [36, 128], strides = [1, 1]} : vector<252x128xf32> to vector<36x128xf32>
    %210 = vector.broadcast %208 : vector<1x128xf32> to vector<36x128xf32>
    %211 = arith.mulf %210, %209 : vector<36x128xf32>
    %212 = vector.extract_strided_slice %190 {offsets = [0, 0], sizes = [1, 128], strides = [1, 1]} : vector<2x128xf32> to vector<1x128xf32>
    %213 = vector.extract_strided_slice %188 {offsets = [144, 0], sizes = [36, 128], strides = [1, 1]} : vector<252x128xf32> to vector<36x128xf32>
    %214 = vector.broadcast %212 : vector<1x128xf32> to vector<36x128xf32>
    %215 = arith.mulf %214, %213 : vector<36x128xf32>
    %216 = vector.extract_strided_slice %190 {offsets = [0, 0], sizes = [1, 128], strides = [1, 1]} : vector<2x128xf32> to vector<1x128xf32>
    %217 = vector.extract_strided_slice %190 {offsets = [1, 0], sizes = [1, 128], strides = [1, 1]} : vector<2x128xf32> to vector<1x128xf32>
    %218 = vector.extract_strided_slice %188 {offsets = [180, 0], sizes = [36, 128], strides = [1, 1]} : vector<252x128xf32> to vector<36x128xf32>
    %219 = vector.broadcast %217 : vector<1x128xf32> to vector<36x128xf32>
    %220 = arith.mulf %219, %218 : vector<36x128xf32>
    %221 = arith.addf %211, %220 : vector<36x128xf32>
    %222 = vector.extract_strided_slice %188 {offsets = [216, 0], sizes = [36, 128], strides = [1, 1]} : vector<252x128xf32> to vector<36x128xf32>
    %223 = vector.broadcast %217 : vector<1x128xf32> to vector<36x128xf32>
    %224 = arith.mulf %223, %222 : vector<36x128xf32>
    %225 = arith.addf %215, %224 : vector<36x128xf32>
    %226 = arith.addf %216, %217 : vector<1x128xf32>
    %227 = arith.mulf %221, %187 : vector<36x128xf32>
    %cst_46 = arith.constant dense<0.000000e+00> : vector<128xf32>
    %228 = vector.multi_reduction <add>, %227, %cst_46 [0] : vector<36x128xf32> to vector<128xf32>
    %229 = vector.shape_cast %228 : vector<128xf32> to vector<1x128xf32>
    %230 = arith.mulf %225, %187 : vector<36x128xf32>
    %cst_47 = arith.constant dense<0.000000e+00> : vector<128xf32>
    %231 = vector.multi_reduction <add>, %230, %cst_47 [0] : vector<36x128xf32> to vector<128xf32>
    %232 = vector.shape_cast %231 : vector<128xf32> to vector<1x128xf32>
    %cst_48 = arith.constant 57.2957802 : f32
    %233 = vector.broadcast %cst_48 : f32 to vector<1x128xf32>
    %234 = arith.mulf %108, %233 : vector<1x128xf32>
    %235 = arith.subf %234, %229 : vector<1x128xf32>
    %cst_49 = arith.constant 0.00277777785 : f32
    %236 = vector.broadcast %cst_49 : f32 to vector<1x128xf32>
    %237 = arith.mulf %235, %236 : vector<1x128xf32>
    %cst_50 = arith.constant 5.000000e-01 : f32
    %238 = vector.broadcast %cst_50 : f32 to vector<1x128xf32>
    %239 = arith.addf %237, %238 : vector<1x128xf32>
    %240 = math.floor %239 : vector<1x128xf32>
    %cst_51 = arith.constant 3.600000e+02 : f32
    %241 = vector.broadcast %cst_51 : f32 to vector<1x128xf32>
    %242 = arith.mulf %241, %240 : vector<1x128xf32>
    %243 = arith.subf %235, %242 : vector<1x128xf32>
    %cst_52 = arith.constant 9.99999974E-5 : f32
    %244 = vector.broadcast %cst_52 : f32 to vector<1x128xf32>
    %245 = arith.maximumf %232, %244 : vector<1x128xf32>
    %246 = arith.divf %243, %245 : vector<1x128xf32>
    %cst_53 = arith.constant 5.000000e-01 : f32
    %247 = vector.broadcast %cst_53 : f32 to vector<1x128xf32>
    %248 = arith.mulf %247, %246 : vector<1x128xf32>
    %249 = arith.mulf %248, %246 : vector<1x128xf32>
    %250 = arith.mulf %226, %249 : vector<1x128xf32>
    %251 = tpu.concatenate %207, %250 in 0 : vector<1x128xf32>, vector<1x128xf32> -> vector<2x128xf32>
    %c0_54 = arith.constant 0 : index
    %c0_55 = arith.constant 0 : index
    %252 = vector.load %arg3[%c0_54, %c0_55] : memref<2x128xf32, #tpu.memory_space<vmem>>, vector<2x128xf32>
    tpu.vector_store %arg3[%c0_54, %c0_55], %251 {strides = array<i32>} : memref<2x128xf32, #tpu.memory_space<vmem>>, vector<2x128xf32>,
    return
  }
  func.func @transform_0(%arg0: i32) -> (i32, i32) {
    %c0_i32 = arith.constant 0 : i32
    %c0_i32_0 = arith.constant 0 : i32
    return %c0_i32, %arg0 : i32, i32
  }
  func.func @transform_1(%arg0: i32) -> (i32, i32) {
    %c0_i32 = arith.constant 0 : i32
    %c0_i32_0 = arith.constant 0 : i32
    %c0_i32_1 = arith.constant 0 : i32
    return %c0_i32, %c0_i32_0 : i32, i32
  }
  func.func @transform_2(%arg0: i32) -> (i32, i32) {
    %c0_i32 = arith.constant 0 : i32
    %c0_i32_0 = arith.constant 0 : i32
    return %c0_i32, %arg0 : i32, i32
  }
}

</mosaic_0001>

<llo_original>
// kernel: tpu_custom_call.1
$region0: #{tpu_custom_call.1}
  #allocation0 [shape = 'u32[]', space=smem, size = 0x4, offset = 0x4, fixed_abs, tag = 'smem constant byte address 0x4 - core index']
  #allocation1 [shape = 'u32[144,128]{1,0:T(1,128)}', space=vmem, size = 0x12000, scoped, tag = 'internal scratch']
  %s0 = inlined_call_operand.vmem [shape: f32[41,128], index: 0, kind: input, shape index: {}]
  %s1 = inlined_call_operand.vmem [shape: f32[252,36], index: 1, kind: input, shape index: {}]
  %s2 = inlined_call_operand.hbm [shape: f32[2,128], index: 2, kind: output, shape index: {}]
  %s3 = sld [smem:[#allocation0]]
  $region18: #{tpu_custom_call.1} parent=0
    _
  %s5 = ssub.s32 1, %s3
  %s6 = scalar_select 0, %s5, %s3
  $region1: #{tpu_custom_call.1} parent=0
    #allocation2 [shape = 'u8[1024]{0}', space=vmem, size = 0x400, scoped, tag = 'output window, operand 0, single buffered']
    #allocation3 [shape = 's32[1]{0}', space=sflag, size = 0x4, scoped, tag = 'scoped memory for tpu_custom_call.1']
    %7 = vsyncpa [#allocation3], 0
    // Predicated region
    $region2: #{tpu_custom_call.1} parent=1 // pred_check
      _
    $region3: #{tpu_custom_call.1} parent=1 // pred_check_branch
      %9 = sbr.rel (0) target = $region5
    $region4: #{tpu_custom_call.1} parent=1 // pred_region
      _
    $region5: #{tpu_custom_call.1} parent=1 // pred_fallthru
      _
    // Predicated region
    $region6: #{tpu_custom_call.1} parent=1 // pred_check
      _
    $region7: #{tpu_custom_call.1} parent=1 // pred_check_branch
      %11 = sbr.rel (0) target = $region9
    $region8: #{tpu_custom_call.1} parent=1 // pred_region
      _
    $region9: #{tpu_custom_call.1} parent=1 // pred_fallthru
      _
    %v12 = vld [vmem:[%s1] sm:$0xff]
    %v13 = vld [vmem:[%s1 + $0x8] sm:$0xff]
    %v14 = vld [vmem:[%s1 + $0x10] sm:$0xff]
    %v15 = vld [vmem:[%s1 + $0x18] sm:$0xff]
    %v16 = vld [vmem:[%s1 + $0x20] sm:$0xff]
    %v17 = vld [vmem:[%s1 + $0x28] sm:$0xff]
    %v18 = vld [vmem:[%s1 + $0x30] sm:$0xff]
    %v19 = vld [vmem:[%s1 + $0x38] sm:$0xff]
    %v20 = vld [vmem:[%s1 + $0x40] sm:$0xff]
    %v21 = vld [vmem:[%s1 + $0x48] sm:$0xff]
    %v22 = vld [vmem:[%s1 + $0x50] sm:$0xff]
    %v23 = vld [vmem:[%s1 + $0x58] sm:$0xff]
    %v24 = vld [vmem:[%s1 + $0x60] sm:$0xff]
    %v25 = vld [vmem:[%s1 + $0x68] sm:$0xff]
    %v26 = vld [vmem:[%s1 + $0x70] sm:$0xff]
    %v27 = vld [vmem:[%s1 + $0x78] sm:$0xff]
    %v28 = vld [vmem:[%s1 + $0x80] sm:$0xff]
    %v29 = vld [vmem:[%s1 + $0x88] sm:$0xff]
    %v30 = vld [vmem:[%s1 + $0x90] sm:$0xff]
    %v31 = vld [vmem:[%s1 + $0x98] sm:$0xff]
    %v32 = vld [vmem:[%s1 + $0xa0] sm:$0xff]
    %v33 = vld [vmem:[%s1 + $0xa8] sm:$0xff]
    %v34 = vld [vmem:[%s1 + $0xb0] sm:$0xff]
    %v35 = vld [vmem:[%s1 + $0xb8] sm:$0xff]
    %v36 = vld [vmem:[%s1 + $0xc0] sm:$0xff]
    %v37 = vld [vmem:[%s1 + $0xc8] sm:$0xff]
    %v38 = vld [vmem:[%s1 + $0xd0] sm:$0xff]
    %v39 = vld [vmem:[%s1 + $0xd8] sm:$0xff]
    %v40 = vld [vmem:[%s1 + $0xe0] sm:$0xff]
    %v41 = vld [vmem:[%s1 + $0xe8] sm:$0xff]
    %v42 = vld [vmem:[%s1 + $0xf0] sm:$0xff]
    %v43 = vld [vmem:[%s1 + $0xf8] sm:$0xf]
    %v44 = vld [vmem:[%s0] sm:$0x7]
    %v45 = vld [vmem:[%s0 + $0x3] sm:$0x7]
    %v46 = vld [vmem:[%s0 + $0x6] sm:$0x7]
    %v47 = vld [vmem:[%s0 + $0x9] sm:$0x7]
    %v48 = vld [vmem:[%s0 + $0xc] sm:$0x7]
    %v49 = vld [vmem:[%s0 + $0xf] sm:$0x7]
    %v50 = vld [vmem:[%s0 + $0x12] sm:$0x7]
    %v51 = vld [vmem:[%s0 + $0x15] sm:$0x7]
    %v52 = vld [vmem:[%s0 + $0x18] sm:$0x7]
    %v53 = vld [vmem:[%s0 + $0x1b] sm:$0x7]
    %v54 = vld [vmem:[%s0 + $0x1e] sm:$0x7]
    %v55 = vld [vmem:[%s0 + $0x21] sm:$0x7]
    %v56 = vsub.f32 %v47, %v44
    %v57 = vsub.f32 %v48, %v45
    %v58 = vsub.f32 %v49, %v46
    %v59 = vsub.f32 %v50, %v47
    %v60 = vsub.f32 %v51, %v48
    %v61 = vsub.f32 %v52, %v49
    %v62 = vsub.f32 %v53, %v50
    %v63 = vsub.f32 %v54, %v51
    %v64 = vsub.f32 %v55, %v52
    %v65 = vmul.f32 %v57, %v61
    %v66 = vmul.f32 %v58, %v60
    %v67 = vsub.f32 %v65, %v66
    %v68 = vmul.f32 %v58, %v59
    %v69 = vmul.f32 %v56, %v61
    %v70 = vsub.f32 %v68, %v69
    %v71 = vmul.f32 %v56, %v60
    %v72 = vmul.f32 %v57, %v59
    %v73 = vsub.f32 %v71, %v72
    %v74 = vmul.f32 %v60, %v64
    %v75 = vmul.f32 %v61, %v63
    %v76 = vsub.f32 %v74, %v75
    %v77 = vmul.f32 %v61, %v62
    %v78 = vmul.f32 %v59, %v64
    %v79 = vsub.f32 %v77, %v78
    %v80 = vmul.f32 %v59, %v63
    %v81 = vmul.f32 %v60, %v62
    %v82 = vsub.f32 %v80, %v81
    %v83 = vmul.f32 %v59, %v59
    %v84 = vmul.f32 %v60, %v60
    %v85 = vadd.f32 %v83, %v84
    %v86 = vmul.f32 %v61, %v61
    %v87 = vadd.f32 %v85, %v86
    %v88 = vadd.f32 %v87, 1e-09
    %v89 = vrsqrt.pop %v88
    %v90 = vmul.f32 %v59, %v89
    %v91 = vmul.f32 %v60, %v89
    %v92 = vmul.f32 %v61, %v89
    %v93 = vmul.f32 %v70, %v92
    %v94 = vmul.f32 %v73, %v91
    %v95 = vsub.f32 %v93, %v94
    %v96 = vmul.f32 %v73, %v90
    %v97 = vmul.f32 %v67, %v92
    %v98 = vsub.f32 %v96, %v97
    %v99 = vmul.f32 %v67, %v91
    %v100 = vmul.f32 %v70, %v90
    %v101 = vsub.f32 %v99, %v100
    %v102 = vmul.f32 %v95, %v76
    %v103 = vmul.f32 %v98, %v79
    %v104 = vadd.f32 %v102, %v103
    %v105 = vmul.f32 %v101, %v82
    %v106 = vadd.f32 %v104, %v105
    %v107 = vmul.f32 %v67, %v76
    %v108 = vmul.f32 %v70, %v79
    %v109 = vadd.f32 %v107, %v108
    %v110 = vmul.f32 %v73, %v82
    %v111 = vadd.f32 %v109, %v110
    %v112 = vand.u32 2147483647, %v111
    %v113 = vand.u32 2147483647, %v106
    %v114 = vmin.f32 %v112, %v113
    %v115 = vmax.f32 %v112, %v113
    %v116 = vadd.f32 %v115, 1e-30
    %v117 = vrcp.pop %v116
    %v118 = vmul.f32 %v114, %v117
    %v119 = vmul.f32 %v118, %v118
    %v120 = vmul.f32 %v119, 0.0208351
    %v121 = vadd.f32 %v120, -0.085133
    %v122 = vmul.f32 %v119, %v121
    %v123 = vadd.f32 %v122, 0.180141
    %v124 = vmul.f32 %v119, %v123
    %v125 = vadd.f32 %v124, -0.3302995
    %v126 = vmul.f32 %v119, %v125
    %v127 = vadd.f32 %v126, 0.999866
    %v128 = vmul.f32 %v118, %v127
    %vm129 = vcmp.gt.f32.partialorder %v113, %v112
    %v130 = vsub.f32 1.5707964, %v128
    %v131 = vsel %vm129, %v130, %v128
    %vm132 = vcmp.lt.f32.partialorder %v111, 0.0
    %v133 = vsub.f32 3.1415927, %v131
    %v134 = vsel %vm132, %v133, %v131
    %vm135 = vcmp.lt.f32.partialorder %v106, 0.0
    %v136 = vsub.f32 0.0, %v134
    %v137 = vsel %vm135, %v136, %v134
    %v138 = vlaneseq
    %v139 = vshrl.u32 %v138, 7
    %v140 = vadd.s32 %v139, 8
    %v141 = vadd.s32 %v139, 16
    %v142 = vadd.s32 %v139, 24
    %v143 = vadd.s32 %v139, 32
    %v144 = vsub.f32 %v137, -3.1415927
    %v145 = vmul.f32 %v144, 5.729578
    %v146 = vfloor.f32 %v145
    %v147 = vsub.f32 %v145, %v146
    %v148 = vcvt.f32.s32.to.zero.pseudo %v146
    %vm149 = vcmp.lt.s32.totalorder %v148, 0
    %v150 = vadd.s32 %v148, 36
    %v151 = vsel %vm149, %v150, %v148
    %vm152 = vcmp.ge.s32.totalorder %v151, 36
    %v153 = vsub.s32 %v151, 36
    %v154 = vsel %vm152, %v153, %v151
    %v155 = vadd.s32 %v154, 1
    %vm156 = vcmp.ge.s32.totalorder %v155, 36
    %v157 = vsub.s32 %v155, 36
    %v158 = vsel %vm156, %v157, %v155
    %v159 = vlaneseq
    %v160 = vshrl.u32 %v159, 7
    %v161 = vsub.s32 0, %v160
    %v162 = vrot.slane %v154, %v161
    %vm163 = vcmp.eq.s32.totalorder %v139, %v162
    %vm164 = vcmp.eq.s32.totalorder %v140, %v162
    %vm165 = vcmp.eq.s32.totalorder %v141, %v162
    %vm166 = vcmp.eq.s32.totalorder %v142, %v162
    %vm167 = vcmp.eq.s32.totalorder %v143, %v162
    %v168 = vsel %vm163, 1, 0
    %v169 = vsel %vm164, 1, 0
    %v170 = vsel %vm165, 1, 0
    %v171 = vsel %vm166, 1, 0
    %v172 = vsel %vm167, 1, 0
    %v173 = vcvt.s32.f32 %v168
    %v174 = vcvt.s32.f32 %v169
    %v175 = vcvt.s32.f32 %v170
    %v176 = vcvt.s32.f32 %v171
    %v177 = vcvt.s32.f32 %v172
    %v178 = vsub.f32 1.0, %v147
    %v179 = vlaneseq
    %v180 = vshrl.u32 %v179, 7
    %v181 = vsub.s32 0, %v180
    %v182 = vrot.slane %v178, %v181
    %v183 = vmul.f32 %v173, %v182
    %v184 = vmul.f32 %v174, %v182
    %v185 = vmul.f32 %v175, %v182
    %v186 = vmul.f32 %v176, %v182
    %v187 = vmul.f32 %v177, %v182
    %v188 = vlaneseq
    %v189 = vshrl.u32 %v188, 7
    %v190 = vsub.s32 0, %v189
    %v191 = vrot.slane %v158, %v190
    %vm192 = vcmp.eq.s32.totalorder %v139, %v191
    %vm193 = vcmp.eq.s32.totalorder %v140, %v191
    %vm194 = vcmp.eq.s32.totalorder %v141, %v191
    %vm195 = vcmp.eq.s32.totalorder %v142, %v191
    %vm196 = vcmp.eq.s32.totalorder %v143, %v191
    %v197 = vsel %vm192, 1, 0
    %v198 = vsel %vm193, 1, 0
    %v199 = vsel %vm194, 1, 0
    %v200 = vsel %vm195, 1, 0
    %v201 = vsel %vm196, 1, 0
    %v202 = vcvt.s32.f32 %v197
    %v203 = vcvt.s32.f32 %v198
    %v204 = vcvt.s32.f32 %v199
    %v205 = vcvt.s32.f32 %v200
    %v206 = vcvt.s32.f32 %v201
    %v207 = vlaneseq
    %v208 = vshrl.u32 %v207, 7
    %v209 = vsub.s32 0, %v208
    %v210 = vrot.slane %v147, %v209
    %v211 = vmul.f32 %v202, %v210
    %v212 = vmul.f32 %v203, %v210
    %v213 = vmul.f32 %v204, %v210
    %v214 = vmul.f32 %v205, %v210
    %v215 = vmul.f32 %v206, %v210
    %v216 = vadd.f32 %v183, %v211
    %v217 = vadd.f32 %v184, %v212
    %v218 = vadd.f32 %v185, %v213
    %v219 = vadd.f32 %v186, %v214
    %v220 = vadd.f32 %v187, %v215
    %v221 = vlaneseq
    %v222 = vshrl.u32 %v221, 7
    %v223 = vsub.s32 1, %v222
    %v224 = vrot.slane %v154, %v223
    %vm225 = vcmp.eq.s32.totalorder %v139, %v224
    %vm226 = vcmp.eq.s32.totalorder %v140, %v224
    %vm227 = vcmp.eq.s32.totalorder %v141, %v224
    %vm228 = vcmp.eq.s32.totalorder %v142, %v224
    %vm229 = vcmp.eq.s32.totalorder %v143, %v224
    %v230 = vsel %vm225, 1, 0
    %v231 = vsel %vm226, 1, 0
    %v232 = vsel %vm227, 1, 0
    %v233 = vsel %vm228, 1, 0
    %v234 = vsel %vm229, 1, 0
    %v235 = vcvt.s32.f32 %v230
    %v236 = vcvt.s32.f32 %v231
    %v237 = vcvt.s32.f32 %v232
    %v238 = vcvt.s32.f32 %v233
    %v239 = vcvt.s32.f32 %v234
    %v240 = vlaneseq
    %v241 = vshrl.u32 %v240, 7
    %v242 = vsub.s32 1, %v241
    %v243 = vrot.slane %v178, %v242
    %v244 = vmul.f32 %v235, %v243
    %v245 = vmul.f32 %v236, %v243
    %v246 = vmul.f32 %v237, %v243
    %v247 = vmul.f32 %v238, %v243
    %v248 = vmul.f32 %v239, %v243
    %v249 = vlaneseq
    %v250 = vshrl.u32 %v249, 7
    %v251 = vsub.s32 1, %v250
    %v252 = vrot.slane %v158, %v251
    %vm253 = vcmp.eq.s32.totalorder %v139, %v252
    %vm254 = vcmp.eq.s32.totalorder %v140, %v252
    %vm255 = vcmp.eq.s32.totalorder %v141, %v252
    %vm256 = vcmp.eq.s32.totalorder %v142, %v252
    %vm257 = vcmp.eq.s32.totalorder %v143, %v252
    %v258 = vsel %vm253, 1, 0
    %v259 = vsel %vm254, 1, 0
    %v260 = vsel %vm255, 1, 0
    %v261 = vsel %vm256, 1, 0
    %v262 = vsel %vm257, 1, 0
    %v263 = vcvt.s32.f32 %v258
    %v264 = vcvt.s32.f32 %v259
    %v265 = vcvt.s32.f32 %v260
    %v266 = vcvt.s32.f32 %v261
    %v267 = vcvt.s32.f32 %v262
    %v268 = vlaneseq
    %v269 = vshrl.u32 %v268, 7
    %v270 = vsub.s32 1, %v269
    %v271 = vrot.slane %v147, %v270
    %v272 = vmul.f32 %v263, %v271
    %v273 = vmul.f32 %v264, %v271
    %v274 = vmul.f32 %v265, %v271
    %v275 = vmul.f32 %v266, %v271
    %v276 = vmul.f32 %v267, %v271
    %v277 = vadd.f32 %v244, %v272
    %v278 = vadd.f32 %v245, %v273
    %v279 = vadd.f32 %v246, %v274
    %v280 = vadd.f32 %v247, %v275
    %v281 = vadd.f32 %v248, %v276
    %vm282 = vcmask 293888
    %v284 = vsel %vm282, %v12, 0
    %v287 = vsel %vm282, %v13, 0
    %v290 = vsel %vm282, %v14, 0
    %v293 = vsel %vm282, %v15, 0
    %v296 = vsel %vm282, %v16, 0
    %v299 = vsel %vm282, %v17, 0
    %v302 = vsel %vm282, %v18, 0
    %v305 = vsel %vm282, %v19, 0
    %v308 = vsel %vm282, %v20, 0
    %v311 = vsel %vm282, %v21, 0
    %v314 = vsel %vm282, %v22, 0
    %v317 = vsel %vm282, %v23, 0
    %v320 = vsel %vm282, %v24, 0
    %v323 = vsel %vm282, %v25, 0
    %v326 = vsel %vm282, %v26, 0
    %v329 = vsel %vm282, %v27, 0
    %v332 = vsel %vm282, %v28, 0
    %v335 = vsel %vm282, %v29, 0
    %v338 = vsel %vm282, %v30, 0
    %v341 = vsel %vm282, %v31, 0
    %v344 = vsel %vm282, %v32, 0
    %v347 = vsel %vm282, %v33, 0
    %v350 = vsel %vm282, %v34, 0
    %v353 = vsel %vm282, %v35, 0
    %v356 = vsel %vm282, %v36, 0
    %v359 = vsel %vm282, %v37, 0
    %v362 = vsel %vm282, %v38, 0
    %v365 = vsel %vm282, %v39, 0
    %v368 = vsel %vm282, %v40, 0
    %v371 = vsel %vm282, %v41, 0
    %v374 = vsel %vm282, %v42, 0
    %v377 = vsel %vm282, %v43, 0
    %vm379 = vcmask 1043456
    %v381 = vsel %vm379, %v220, 0
    %383 = vmatprep.subr.mxu0 0.0
    %384 = vmatpush1.msra.mxu0 %v216
    %385 = vmatprep.subr.mxu0 0.0
    %386 = vmatpush1.msra.mxu0 %v217
    %387 = vmatprep.subr.mxu0 0.0
    %388 = vmatpush1.msra.mxu0 %v218
    %389 = vmatprep.subr.mxu0 0.0
    %390 = vmatpush1.msra.mxu0 %v219
    %391 = vmatprep.subr.mxu0 0.0
    %392 = vmatpush1.msra.mxu0 %v381
    %393 = vmatprep.subr.mxu0 0.0
    %394 = vmatpush1.msra.mxu0 0.0
    %395 = vmatprep.subr.mxu0 0.0
    %396 = vmatpush1.msra.mxu0 0.0
    %397 = vmatprep.subr.mxu0 0.0
    %398 = vmatpush1.msra.mxu0 0.0
    %399 = vmatprep.subr.mxu0 0.0
    %400 = vmatpush1.msra.mxu0 0.0
    %401 = vmatprep.subr.mxu0 0.0
    %402 = vmatpush1.msra.mxu0 0.0
    %403 = vmatprep.subr.mxu0 0.0
    %404 = vmatpush1.msra.mxu0 0.0
    %405 = vmatprep.subr.mxu0 0.0
    %406 = vmatpush1.msra.mxu0 0.0
    %407 = vmatprep.subr.mxu0 0.0
    %408 = vmatpush1.msra.mxu0 0.0
    %409 = vmatprep.subr.mxu0 0.0
    %410 = vmatpush1.msra.mxu0 0.0
    %411 = vmatprep.subr.mxu0 0.0
    %412 = vmatpush1.msra.mxu0 0.0
    %413 = vmatprep.subr.mxu0 0.0
    %414 = vmatpush1.msra.mxu0 0.0
    %415 = vmatprep.subr.mxu0 0.0
    %416 = vmatpush1.msra.mxu0 0.0
    %417 = vmatprep.subr.mxu0 0.0
    %418 = vmatpush1.msra.mxu0 0.0
    %419 = vmatprep.subr.mxu0 0.0
    %420 = vmatpush1.msra.mxu0 0.0
    %421 = vmatprep.subr.mxu0 0.0
    %422 = vmatpush1.msra.mxu0 0.0
    %423 = vmatprep.subr.mxu0 0.0
    %424 = vmatpush1.msra.mxu0 0.0
    %425 = vmatprep.subr.mxu0 0.0
    %426 = vmatpush1.msra.mxu0 0.0
    %427 = vmatprep.subr.mxu0 0.0
    %428 = vmatpush1.msra.mxu0 0.0
    %429 = vmatprep.subr.mxu0 0.0
    %430 = vmatpush1.msra.mxu0 0.0
    %431 = vmatprep.subr.mxu0 0.0
    %432 = vmatpush1.msra.mxu0 0.0
    %433 = vmatprep.subr.mxu0 0.0
    %434 = vmatpush1.msra.mxu0 0.0
    %435 = vmatprep.subr.mxu0 0.0
    %436 = vmatpush1.msra.mxu0 0.0
    %437 = vmatprep.subr.mxu0 0.0
    %438 = vmatpush1.msra.mxu0 0.0
    %439 = vmatprep.subr.mxu0 0.0
    %440 = vmatpush1.msra.mxu0 0.0
    %441 = vmatprep.subr.mxu0 0.0
    %442 = vmatpush1.msra.mxu0 0.0
    %443 = vmatprep.subr.mxu0 0.0
    %444 = vmatpush1.msra.mxu0 0.0
    %445 = vmatprep.subr.mxu0 0.0
    %446 = vmatpush1.msra.mxu0 0.0
    %447 = vmatprep.mubr.f32.mxu0 0.0
    %448 = vmatmul.mubr.f32.gmra.mrb[0].mxu0 %v284
    %v449 = vpop.f32.mrb[0].mxu0
    %v450 = vadd.f32 0.0, %v449
    %v451 = vpop.f32.mrb[0].mxu0
    %452 = vmatprep.mubr.f32.mxu0 0.0
    %453 = vmatmul.mubr.f32.gmra.mrb[0].mxu0 %v287
    %v454 = vpop.f32.mrb[0].mxu0
    %v455 = vadd.f32 0.0, %v454
    %v456 = vpop.f32.mrb[0].mxu0
    %457 = vmatprep.mubr.f32.mxu0 0.0
    %458 = vmatmul.mubr.f32.gmra.mrb[0].mxu0 %v290
    %v459 = vpop.f32.mrb[0].mxu0
    %v460 = vadd.f32 0.0, %v459
    %v461 = vpop.f32.mrb[0].mxu0
    %462 = vmatprep.mubr.f32.mxu0 0.0
    %463 = vmatmul.mubr.f32.gmra.mrb[0].mxu0 %v293
    %v464 = vpop.f32.mrb[0].mxu0
    %v465 = vadd.f32 0.0, %v464
    %v466 = vpop.f32.mrb[0].mxu0
    %467 = vmatprep.mubr.f32.mxu0 0.0
    %468 = vmatmul.mubr.f32.gmra.mrb[0].mxu0 %v296
    %v469 = vpop.f32.mrb[0].mxu0
    %v470 = vadd.f32 0.0, %v469
    %v471 = vpop.f32.mrb[0].mxu0
    %472 = vmatprep.mubr.f32.mxu0 0.0
    %473 = vmatmul.mubr.f32.gmra.mrb[0].mxu0 %v299
    %v474 = vpop.f32.mrb[0].mxu0
    %v475 = vadd.f32 0.0, %v474
    %v476 = vpop.f32.mrb[0].mxu0
    %477 = vmatprep.mubr.f32.mxu0 0.0
    %478 = vmatmul.mubr.f32.gmra.mrb[0].mxu0 %v302
    %v479 = vpop.f32.mrb[0].mxu0
    %v480 = vadd.f32 0.0, %v479
    %v481 = vpop.f32.mrb[0].mxu0
    %482 = vmatprep.mubr.f32.mxu0 0.0
    %483 = vmatmul.mubr.f32.gmra.mrb[0].mxu0 %v305
    %v484 = vpop.f32.mrb[0].mxu0
    %v485 = vadd.f32 0.0, %v484
    %v486 = vpop.f32.mrb[0].mxu0
    %487 = vmatprep.mubr.f32.mxu0 0.0
    %488 = vmatmul.mubr.f32.gmra.mrb[0].mxu0 %v308
    %v489 = vpop.f32.mrb[0].mxu0
    %v490 = vadd.f32 0.0, %v489
    %v491 = vpop.f32.mrb[0].mxu0
    %492 = vmatprep.mubr.f32.mxu0 0.0
    %493 = vmatmul.mubr.f32.gmra.mrb[0].mxu0 %v311
    %v494 = vpop.f32.mrb[0].mxu0
    %v495 = vadd.f32 0.0, %v494
    %v496 = vpop.f32.mrb[0].mxu0
    %497 = vmatprep.mubr.f32.mxu0 0.0
    %498 = vmatmul.mubr.f32.gmra.mrb[0].mxu0 %v314
    %v499 = vpop.f32.mrb[0].mxu0
    %v500 = vadd.f32 0.0, %v499
    %v501 = vpop.f32.mrb[0].mxu0
    %502 = vmatprep.mubr.f32.mxu0 0.0
    %503 = vmatmul.mubr.f32.gmra.mrb[0].mxu0 %v317
    %v504 = vpop.f32.mrb[0].mxu0
    %v505 = vadd.f32 0.0, %v504
    %v506 = vpop.f32.mrb[0].mxu0
    %507 = vmatprep.mubr.f32.mxu0 0.0
    %508 = vmatmul.mubr.f32.gmra.mrb[0].mxu0 %v320
    %v509 = vpop.f32.mrb[0].mxu0
    %v510 = vadd.f32 0.0, %v509
    %v511 = vpop.f32.mrb[0].mxu0
    %512 = vmatprep.mubr.f32.mxu0 0.0
    %513 = vmatmul.mubr.f32.gmra.mrb[0].mxu0 %v323
    %v514 = vpop.f32.mrb[0].mxu0
    %v515 = vadd.f32 0.0, %v514
    %v516 = vpop.f32.mrb[0].mxu0
    %517 = vmatprep.mubr.f32.mxu0 0.0
    %518 = vmatmul.mubr.f32.gmra.mrb[0].mxu0 %v326
    %v519 = vpop.f32.mrb[0].mxu0
    %v520 = vadd.f32 0.0, %v519
    %v521 = vpop.f32.mrb[0].mxu0
    %522 = vmatprep.mubr.f32.mxu0 0.0
    %523 = vmatmul.mubr.f32.gmra.mrb[0].mxu0 %v329
    %v524 = vpop.f32.mrb[0].mxu0
    %v525 = vadd.f32 0.0, %v524
    %v526 = vpop.f32.mrb[0].mxu0
    %527 = vmatprep.mubr.f32.mxu0 0.0
    %528 = vmatmul.mubr.f32.gmra.mrb[0].mxu0 %v332
    %v529 = vpop.f32.mrb[0].mxu0
    %v530 = vadd.f32 0.0, %v529
    %v531 = vpop.f32.mrb[0].mxu0
    %532 = vmatprep.mubr.f32.mxu0 0.0
    %533 = vmatmul.mubr.f32.gmra.mrb[0].mxu0 %v335
    %v534 = vpop.f32.mrb[0].mxu0
    %v535 = vadd.f32 0.0, %v534
    %v536 = vpop.f32.mrb[0].mxu0
    %537 = vmatprep.mubr.f32.mxu0 0.0
    %538 = vmatmul.mubr.f32.gmra.mrb[0].mxu0 %v338
    %v539 = vpop.f32.mrb[0].mxu0
    %v540 = vadd.f32 0.0, %v539
    %v541 = vpop.f32.mrb[0].mxu0
    %542 = vmatprep.mubr.f32.mxu0 0.0
    %543 = vmatmul.mubr.f32.gmra.mrb[0].mxu0 %v341
    %v544 = vpop.f32.mrb[0].mxu0
    %v545 = vadd.f32 0.0, %v544
    %v546 = vpop.f32.mrb[0].mxu0
    %547 = vmatprep.mubr.f32.mxu0 0.0
    %548 = vmatmul.mubr.f32.gmra.mrb[0].mxu0 %v344
    %v549 = vpop.f32.mrb[0].mxu0
    %v550 = vadd.f32 0.0, %v549
    %v551 = vpop.f32.mrb[0].mxu0
    %552 = vmatprep.mubr.f32.mxu0 0.0
    %553 = vmatmul.mubr.f32.gmra.mrb[0].mxu0 %v347
    %v554 = vpop.f32.mrb[0].mxu0
    %v555 = vadd.f32 0.0, %v554
    %v556 = vpop.f32.mrb[0].mxu0
    %557 = vmatprep.mubr.f32.mxu0 0.0
    %558 = vmatmul.mubr.f32.gmra.mrb[0].mxu0 %v350
    %v559 = vpop.f32.mrb[0].mxu0
    %v560 = vadd.f32 0.0, %v559
    %v561 = vpop.f32.mrb[0].mxu0
    %562 = vmatprep.mubr.f32.mxu0 0.0
    %563 = vmatmul.mubr.f32.gmra.mrb[0].mxu0 %v353
    %v564 = vpop.f32.mrb[0].mxu0
    %v565 = vadd.f32 0.0, %v564
    %v566 = vpop.f32.mrb[0].mxu0
    %567 = vmatprep.mubr.f32.mxu0 0.0
    %568 = vmatmul.mubr.f32.gmra.mrb[0].mxu0 %v356
    %v569 = vpop.f32.mrb[0].mxu0
    %v570 = vadd.f32 0.0, %v569
    %v571 = vpop.f32.mrb[0].mxu0
    %572 = vmatprep.mubr.f32.mxu0 0.0
    %573 = vmatmul.mubr.f32.gmra.mrb[0].mxu0 %v359
    %v574 = vpop.f32.mrb[0].mxu0
    %v575 = vadd.f32 0.0, %v574
    %v576 = vpop.f32.mrb[0].mxu0
    %577 = vmatprep.mubr.f32.mxu0 0.0
    %578 = vmatmul.mubr.f32.gmra.mrb[0].mxu0 %v362
    %v579 = vpop.f32.mrb[0].mxu0
    %v580 = vadd.f32 0.0, %v579
    %v581 = vpop.f32.mrb[0].mxu0
    %582 = vmatprep.mubr.f32.mxu0 0.0
    %583 = vmatmul.mubr.f32.gmra.mrb[0].mxu0 %v365
    %v584 = vpop.f32.mrb[0].mxu0
    %v585 = vadd.f32 0.0, %v584
    %v586 = vpop.f32.mrb[0].mxu0
    %587 = vmatprep.mubr.f32.mxu0 0.0
    %588 = vmatmul.mubr.f32.gmra.mrb[0].mxu0 %v368
    %v589 = vpop.f32.mrb[0].mxu0
    %v590 = vadd.f32 0.0, %v589
    %v591 = vpop.f32.mrb[0].mxu0
    %592 = vmatprep.mubr.f32.mxu0 0.0
    %593 = vmatmul.mubr.f32.gmra.mrb[0].mxu0 %v371
    %v594 = vpop.f32.mrb[0].mxu0
    %v595 = vadd.f32 0.0, %v594
    %v596 = vpop.f32.mrb[0].mxu0
    %597 = vmatprep.mubr.f32.mxu0 0.0
    %598 = vmatmul.mubr.f32.gmra.mrb[0].mxu0 %v374
    %v599 = vpop.f32.mrb[0].mxu0
    %v600 = vadd.f32 0.0, %v599
    %v601 = vpop.f32.mrb[0].mxu0
    %602 = vmatprep.mubr.f32.mxu0 0.0
    %603 = vmatmul.mubr.f32.gmra.mrb[0].mxu0 %v377
    %v604 = vpop.f32.mrb[0].mxu0
    %v605 = vadd.f32 0.0, %v604
    %v606 = vpop.f32.mrb[0].mxu0
    %607 = vdwg.mxu0
    %v608 = vld [vmem:[%s0 + $0x24] sm:$0x7]
    %v609 = vld [vmem:[%s0 + $0x27] sm:$0x3]
    %v610 = vlaneseq
    %v611 = vshrl.u32 %v610, 7
    %v612 = vsub.s32 0, %v611
    %v613 = vrot.slane %v608, %v612
    %v614 = vmul.f32 %v613, %v450
    %v615 = vmul.f32 %v613, %v455
    %v616 = vmul.f32 %v613, %v460
    %v617 = vmul.f32 %v613, %v465
    %v618 = vmul.f32 %v613, %v470
    %v619 = vlaneseq
    %v620 = vshrl.u32 %v619, 7
    %v621 = vsub.s32 1, %v620
    %v622 = vrot.slane %v608, %v621
    %v623 = vmul.f32 %v622, %v470
    %v624 = vmul.f32 %v622, %v475
    %v625 = vmul.f32 %v622, %v480
    %v626 = vmul.f32 %v622, %v485
    %v627 = vmul.f32 %v622, %v490
    %v633 = vrot.slane %v623, 4
    %v634 = vrot.slane %v624, 4
    %v635 = vsel %vm379, %v633, %v634
    %v636 = vrot.slane %v625, 4
    %v637 = vsel %vm379, %v634, %v636
    %v638 = vrot.slane %v626, 4
    %v639 = vsel %vm379, %v636, %v638
    %v640 = vrot.slane %v627, 4
    %v641 = vsel %vm379, %v638, %v640
    %v647 = vadd.f32 %v614, %v635
    %v648 = vadd.f32 %v615, %v637
    %v649 = vadd.f32 %v616, %v639
    %v650 = vadd.f32 %v617, %v641
    %v651 = vadd.f32 %v618, %v640
    %v652 = vlaneseq
    %v653 = vshrl.u32 %v652, 7
    %v654 = vsub.s32 2, %v653
    %v655 = vrot.slane %v608, %v654
    %v656 = vmul.f32 %v655, %v495
    %v657 = vmul.f32 %v655, %v500
    %v658 = vmul.f32 %v655, %v505
    %v659 = vmul.f32 %v655, %v510
    %v660 = vmul.f32 %v655, %v515
    %v661 = vadd.f32 %v647, %v656
    %v662 = vadd.f32 %v648, %v657
    %v663 = vadd.f32 %v649, %v658
    %v664 = vadd.f32 %v650, %v659
    %v665 = vadd.f32 %v651, %v660
    %v666 = vmul.f32 %v661, %v277
    %v667 = vmul.f32 %v662, %v278
    %v668 = vmul.f32 %v663, %v279
    %v669 = vmul.f32 %v664, %v280
    %v670 = vmul.f32 %v665, %v281
    %v671 = vadd.f32 %v666, %v667
    %v672 = vadd.f32 %v671, %v668
    %v673 = vadd.f32 %v672, %v669
    %v674 = vsel %vm379, %v670, 0.0
    %v675 = vadd.f32 %v673, %v674
    %v676 = vrot.slane %v675, 4
    %v677 = vadd.f32 %v675, %v676
    %v678 = vrot.slane %v677, 2
    %v679 = vadd.f32 %v677, %v678
    %v680 = vrot.slane %v679, 1
    %v681 = vadd.f32 %v679, %v680
    %v682 = vlaneseq
    %v683 = vshrl.u32 %v682, 7
    %v684 = vsub.s32 0, %v683
    %v685 = vrot.slane %v609, %v684
    %v686 = vmul.f32 %v685, %v515
    %v687 = vmul.f32 %v685, %v520
    %v688 = vmul.f32 %v685, %v525
    %v689 = vmul.f32 %v685, %v530
    %v690 = vmul.f32 %v685, %v535
    %v691 = vmul.f32 %v685, %v540
    %v692 = vmul.f32 %v685, %v545
    %v693 = vmul.f32 %v685, %v550
    %v694 = vmul.f32 %v685, %v555
    %v695 = vmul.f32 %v685, %v560
    %v696 = vlaneseq
    %v697 = vshrl.u32 %v696, 7
    %v698 = vsub.s32 1, %v697
    %v699 = vrot.slane %v609, %v698
    %v700 = vmul.f32 %v699, %v560
    %v701 = vmul.f32 %v699, %v565
    %v702 = vmul.f32 %v699, %v570
    %v703 = vmul.f32 %v699, %v575
    %v704 = vmul.f32 %v699, %v580
    %v705 = vadd.f32 %v686, %v700
    %v706 = vadd.f32 %v687, %v701
    %v707 = vadd.f32 %v688, %v702
    %v708 = vadd.f32 %v689, %v703
    %v709 = vadd.f32 %v690, %v704
    %v710 = vmul.f32 %v699, %v585
    %v711 = vmul.f32 %v699, %v590
    %v712 = vmul.f32 %v699, %v595
    %v713 = vmul.f32 %v699, %v600
    %v714 = vmul.f32 %v699, %v605
    %v715 = vadd.f32 %v691, %v710
    %v716 = vadd.f32 %v692, %v711
    %v717 = vadd.f32 %v693, %v712
    %v718 = vadd.f32 %v694, %v713
    %v719 = vadd.f32 %v695, %v714
    %v721 = vrot.slane %v609, 1
    %v723 = vadd.f32 %v609, %v721
    %v729 = vrot.slane %v277, 4
    %v730 = vrot.slane %v278, 4
    %v731 = vsel %vm379, %v729, %v730
    %v732 = vrot.slane %v279, 4
    %v733 = vsel %vm379, %v730, %v732
    %v734 = vrot.slane %v280, 4
    %v735 = vsel %vm379, %v732, %v734
    %v736 = vrot.slane %v281, 4
    %v737 = vsel %vm379, %v734, %v736
    %v743 = vmul.f32 %v705, %v729
    %v744 = vmul.f32 %v706, %v731
    %v745 = vmul.f32 %v707, %v733
    %v746 = vmul.f32 %v708, %v735
    %v747 = vmul.f32 %v709, %v737
    %v753 = vrot.slane %v743, 4
    %v754 = vrot.slane %v744, 4
    %v755 = vsel %vm379, %v753, %v754
    %v756 = vrot.slane %v745, 4
    %v757 = vsel %vm379, %v754, %v756
    %v758 = vrot.slane %v746, 4
    %v759 = vsel %vm379, %v756, %v758
    %v760 = vrot.slane %v747, 4
    %v761 = vsel %vm379, %v758, %v760
    %v767 = vadd.f32 %v755, %v757
    %v768 = vadd.f32 %v767, %v759
    %v769 = vadd.f32 %v768, %v761
    %v770 = vsel %vm379, %v760, 0.0
    %v771 = vadd.f32 %v769, %v770
    %v772 = vrot.slane %v771, 4
    %v773 = vadd.f32 %v771, %v772
    %v774 = vrot.slane %v773, 2
    %v775 = vadd.f32 %v773, %v774
    %v776 = vrot.slane %v775, 1
    %v777 = vadd.f32 %v775, %v776
    %v778 = vmul.f32 %v715, %v277
    %v779 = vmul.f32 %v716, %v278
    %v780 = vmul.f32 %v717, %v279
    %v781 = vmul.f32 %v718, %v280
    %v782 = vmul.f32 %v719, %v281
    %v783 = vadd.f32 %v778, %v779
    %v784 = vadd.f32 %v783, %v780
    %v785 = vadd.f32 %v784, %v781
    %v786 = vsel %vm379, %v782, 0.0
    %v787 = vadd.f32 %v785, %v786
    %v788 = vrot.slane %v787, 4
    %v789 = vadd.f32 %v787, %v788
    %v790 = vrot.slane %v789, 2
    %v791 = vadd.f32 %v789, %v790
    %v792 = vrot.slane %v791, 1
    %v793 = vadd.f32 %v791, %v792
    %v794 = vmul.f32 %v137, 57.29578
    %v795 = vsub.f32 %v794, %v777
    %v796 = vmul.f32 %v795, 0.0027777778
    %v797 = vadd.f32 %v796, 0.5
    %v798 = vfloor.f32 %v797
    %v799 = vmul.f32 %v798, 360.0
    %v800 = vsub.f32 %v795, %v799
    %v801 = vmax.f32 %v793, 0.0001
    %v802 = vrcp.pop %v801
    %v803 = vmul.f32 %v800, %v802
    %v804 = vmul.f32 %v803, 0.5
    %v805 = vmul.f32 %v804, %v803
    %v807 = vrot.slane %v805, 2
    %v809 = vmul.f32 %v723, %v807
    %v811 = vrot.slane %v809, 7
    %vm813 = vcmask 1040384
    %v814 = vsel %vm813, %v681, %v811
    %815 = vst [vmem:[#allocation2] sm:$0x3] %v814
    // Predicated region
    $region10: #{tpu_custom_call.1} parent=1 // pred_check
      _
    $region11: #{tpu_custom_call.1} parent=1 // pred_check_branch
      %817 = sbr.rel (0) target = $region13
    $region12: #{tpu_custom_call.1} parent=1 // pred_region
      %s819 = ssub.s32 32, 32
      %820 = vsyncadd [#allocation3], %s819
      %s822 = sshll.u32 [#allocation2], 4
      %s823 = int_to_ptr.vmem [resolvable:$true] %s822
      %825 = dma.vmem_to_hbm [thread:$0]  %s823, 32, %s2, [#allocation3]
    $region13: #{tpu_custom_call.1} parent=1 // pred_fallthru
      _
    // Predicated region
    $region14: #{tpu_custom_call.1} parent=1 // pred_check
      _
    $region15: #{tpu_custom_call.1} parent=1 // pred_check_branch
      %827 = sbr.rel (0) target = $region17
    $region16: #{tpu_custom_call.1} parent=1 // pred_region
      %828 = dma.done [#allocation3], 32
    $region17: #{tpu_custom_call.1} parent=1 // pred_fallthru
      _
    %829 = vsyncpa [#allocation3], 1

</llo_original>
